<compile_context>
chip_gen: v7x
topology: tpu7x:2x2x1
jax: 0.10.0
libtpu: 0.0.40
codegen_flags: <defaults>
</compile_context>

<pallas_src>
import functools
import math

import jax
import jax.numpy as jnp
from jax.experimental import pallas as pl
from jax.experimental.pallas import tpu as pltpu


def auxnet_kernel(x_ref, w1_ref, b1_ref, w2_ref, b2_ref, out_ref, acc_ref, *, hw, thw):
    """One (batch-tile i, spatial-tile k) grid step.

    x_ref:  (tN, Ce, tHW) input slab (original dtype; spatial axis tiled & pipelined)
    w1_ref: (Ce, O)  f32   Linear1 weight with BN scale, 1/(H*W) and channel folding applied
    b1_ref: (1, O)   f32   folded BN bias
    w2_ref: (O, Kp)  f32   Linear2 weight, lane-padded to Kp (multiple of 128)
    b2_ref: (1, Kp)  f32   Linear2 bias, lane-padded
    out_ref:(tN, Kp) f32   logits slab (lane-dense store)
    acc_ref:(tN, Ce) f32   VMEM scratch: running spatial sum across the k axis
    """
    k = pl.program_id(1)

    @pl.when(k == 0)
    def _init():
        acc_ref[...] = jnp.zeros_like(acc_ref)

    x = x_ref[...]
    if hw % thw != 0:  # static: only traced when the last spatial tile is ragged
        # Columns past `hw` hold unspecified pad values; zero them so the sum-pool is
        # exact (zeros are the identity of a sum). VPU select is free under the DMA.
        col = jax.lax.broadcasted_iota(jnp.int32, x.shape, x.ndim - 1) + k * thw
        x = jnp.where(col < hw, x, jnp.zeros_like(x))
    # Sum-pool this spatial tile in f32; the 1/(H*W) mean factor is folded into w1.
    acc_ref[...] += jnp.sum(x.astype(jnp.float32), axis=-1)

    @pl.when(k == pl.num_programs(1) - 1)
    def _finalize():
        # NOTE: batch rows past N (partial last batch tile) carry garbage here; each
        # matmul row mixes only its own pooled row and the masked output writeback
        # drops those rows, so valid rows are unaffected.
        h = jnp.dot(acc_ref[...], w1_ref[...],
                    preferred_element_type=jnp.float32) + b1_ref[...]
        h = jnp.maximum(h, 0.0)                                   # ReLU
        # Dropout(0.2) is identity in eval mode (deterministic forward).
        # TODO(synk): training-mode dropout would need pltpu.prng_seed + stateful_bernoulli.
        out = jnp.dot(h, w2_ref[...],
                      preferred_element_type=jnp.float32) + b2_ref[...]
        out_ref[...] = out.astype(out_ref.dtype)


def _round_up(x, m):
    return (x + m - 1) // m * m


def _pick_tiles(N, Ce, HWe, itemsize, sub, budget_bytes):
    """Choose (tN, tHW) so one x block stays near `budget_bytes` of VMEM, accounting for
    sublane padding of the channel dim (rounded up to the pack `sub`)."""
    ce_pad = _round_up(Ce, sub)
    # Batch tile: small enough that the spatial tile can stay >= ~512 lanes (HBM-roofline
    # plateau); >= 2 batch-grid steps when N >= 16 (v7x megacore); multiple of 8 (or == N)
    # so the (tN, Kp) output block satisfies the (8, 128) block-shape rule.
    tN = min(N, 256, max(1, budget_bytes // (itemsize * ce_pad * 512)))
    if N >= 16:
        tN = min(tN, pl.cdiv(N, 2))
    if tN < N:
        tN = min(N, _round_up(tN, 8))
    # Spatial tile: as wide as the (padding-aware) budget allows, multiple of 128 lanes;
    # if the whole folded spatial extent fits, take it exactly (single, unmasked tile).
    thw_cap = max(128, (budget_bytes // (itemsize * tN * ce_pad)) // 128 * 128)
    tHW = HWe if HWe <= thw_cap else thw_cap
    return tN, tHW


def auxnet_forward(x_nchw, params, *, eps=1e-5, x_block_budget_bytes=4 << 20):
    """AuxNet eval-mode forward. x_nchw: (N, C, H, W) -> logits (N, num_classes) f32.

    x may be f32 or bf16; bf16 activations halve the HBM read that bounds this kernel.
    Raise x_block_budget_bytes (e.g. 8-16 MiB on v6e, together with
    pltpu.CompilerParams(vmem_limit_bytes=...)) only if profiling shows exposed DMA;
    the 4 MiB default already sits on the HBM-roofline plateau and fits v5e/v7x scoped VMEM.
    """
    N, C, H, W = x_nchw.shape
    w1, gamma, beta, run_mean, run_var, w2, b2 = params
    O = w1.shape[1]
    K = w2.shape[1]
    HW = H * W
    itemsize = jnp.dtype(x_nchw.dtype).itemsize
    sub = max(8, 32 // itemsize)            # sublane pack: 8 (f32), 16 (bf16), 32 (int8)

    # Fold BatchNorm (eval-mode running stats) + the 1/(H*W) pool scale into Linear1.
    scale = gamma * jax.lax.rsqrt(run_var + eps)                        # (O,)
    w1f = (w1.astype(jnp.float32) * scale[None, :]) * (1.0 / HW)        # (C, O)
    b1f = (beta - run_mean * scale).reshape(1, O).astype(jnp.float32)   # (1, O)

    # Channel folding: make the channel (sublane) dim a multiple of the pack by folding a
    # factor f of the spatial axis into it. The x reshape is a free row-major regroup;
    # repeating w1f's rows f times keeps the math exact (sum splits across sub-blocks).
    f = sub // math.gcd(C, sub)
    if f > 1 and HW % f == 0:
        Ce, HWe = C * f, HW // f
        w1e = jnp.repeat(w1f, f, axis=0)                                # (Ce, O)
    else:
        f, Ce, HWe, w1e = 1, C, HW, w1f

    # Lane-dense output: pad num_classes to a multiple of 128; slice back after the call.
    Kp = _round_up(max(K, 1), 128)
    w2p = jnp.zeros((O, Kp), jnp.float32).at[:, :K].set(w2.astype(jnp.float32))
    b2p = jnp.zeros((1, Kp), jnp.float32).at[0, :K].set(b2.astype(jnp.float32))

    x3 = x_nchw.reshape(N, Ce, HWe)        # metadata-only reshape, no HBM copy

    tN, tHW = _pick_tiles(N, Ce, HWe, itemsize, sub, x_block_budget_bytes)
    grid = (pl.cdiv(N, tN), pl.cdiv(HWe, tHW))

    kernel = functools.partial(auxnet_kernel, hw=HWe, thw=tHW)
    out_padded = pl.pallas_call(
        kernel,
        out_shape=jax.ShapeDtypeStruct((N, Kp), jnp.float32),
        grid_spec=pltpu.PrefetchScalarGridSpec(
            num_scalar_prefetch=0,
            grid=grid,
            in_specs=[
                pl.BlockSpec((tN, Ce, tHW), lambda i, k: (i, 0, k)),    # x tiles
                pl.BlockSpec((Ce, O), lambda i, k: (0, 0)),             # folded w1
                pl.BlockSpec((1, O), lambda i, k: (0, 0)),              # folded b1
                pl.BlockSpec((O, Kp), lambda i, k: (0, 0)),             # padded w2
                pl.BlockSpec((1, Kp), lambda i, k: (0, 0)),             # padded b2
            ],
            out_specs=pl.BlockSpec((tN, Kp), lambda i, k: (i, 0)),
            scratch_shapes=[pltpu.VMEM((tN, Ce), jnp.float32)],
        ),
        compiler_params=pltpu.CompilerParams(
            dimension_semantics=("parallel", "arbitrary")),
    )(x3, w1e, b1f, w2p, b2p)

    return out_padded[:, :K]


def make_params(key, input_channel, output_channel, num_classes):
    """Deterministic synthetic parameters matching AuxNet's module shapes."""
    k1, k2, k3, k4, k5 = jax.random.split(key, 5)
    # nn.Linear(input_channel, output_channel, bias=False): weight (O, C) -> stored as (C, O)
    w1 = jax.random.normal(k1, (input_channel, output_channel), jnp.float32) * 0.1
    # BatchNorm1d(output_channel): affine + running stats, perturbed so BN math is exercised
    gamma = 1.0 + 0.05 * jax.random.normal(k2, (output_channel,), jnp.float32)
    beta = 0.05 * jax.random.normal(k3, (output_channel,), jnp.float32)
    run_mean = 0.1 * jax.random.normal(k4, (output_channel,), jnp.float32)
    run_var = 1.0 + 0.1 * jax.random.uniform(k5, (output_channel,), jnp.float32)
    # nn.Linear(output_channel, num_classes): weight (K, O) -> stored as (O, K), bias (K,)
    k6, k7 = jax.random.split(k5)
    w2 = jax.random.normal(k6, (output_channel, num_classes), jnp.float32) * 0.1
    b2 = 0.01 * jax.random.normal(k7, (num_classes,), jnp.float32)
    return (w1, gamma, beta, run_mean, run_var, w2, b2)


def auxnet_reference(x_nchw, params, eps=1e-5):
    """Pure-JAX reference (unfused BN/pool) for correctness checking."""
    w1, gamma, beta, run_mean, run_var, w2, b2 = params
    pooled = jnp.mean(x_nchw, axis=(2, 3))                                  # (N, C)
    h = jnp.dot(pooled, w1, precision=jax.lax.Precision.HIGHEST)            # (N, O)
    h = (h - run_mean) * jax.lax.rsqrt(run_var + eps) * gamma + beta
    h = jnp.maximum(h, 0.0)
    return jnp.dot(h, w2, precision=jax.lax.Precision.HIGHEST) + b2         # (N, K)


if __name__ == "__main__":
    key = jax.random.PRNGKey(0)
    kx, kp = jax.random.split(key)

    # 1) Module-scale demo: batch=2, input_channel=4, spatial 16x16, output_channel=32,
    #    num_classes=11, f32 activations.
    N, C, H, W = 2, 4, 16, 16
    OUTPUT_CHANNEL, NUM_CLASSES = 32, 11
    x = jax.random.normal(kx, (N, C, H, W), jnp.float32)
    params = make_params(kp, C, OUTPUT_CHANNEL, NUM_CLASSES)

    out = jax.block_until_ready(auxnet_forward(x, params))
    ref = auxnet_reference(x, params)
    assert out.shape == (N, NUM_CLASSES)
    assert jnp.allclose(out, ref, atol=1e-4, rtol=1e-4), "f32 mismatch vs JAX reference"

    # 2) bf16 activations (halves the HBM read traffic that bounds this kernel).
    x_bf = x.astype(jnp.bfloat16)
    out_bf = jax.block_until_ready(auxnet_forward(x_bf, params))
    ref_bf = auxnet_reference(x_bf.astype(jnp.float32), params)
    assert jnp.allclose(out_bf, ref_bf, atol=2e-3, rtol=2e-3), "bf16 mismatch vs JAX reference"

    # 3) Ragged / multi-tile path: odd spatial width plus a tiny block budget forces
    #    several spatial and batch tiles, exercising the in-kernel column mask, the
    #    multi-step accumulation, and the partial last batch tile (N=20 = 8+8+4).
    kx2, kp2 = jax.random.split(kx)
    N2, C2, H2, W2 = 20, 4, 16, 33
    x2 = jax.random.normal(kx2, (N2, C2, H2, W2), jnp.float32)
    params2 = make_params(kp2, C2, OUTPUT_CHANNEL, NUM_CLASSES)
    out2 = jax.block_until_ready(
        auxnet_forward(x2, params2, x_block_budget_bytes=8 << 10))
    ref2 = auxnet_reference(x2, params2)
    assert out2.shape == (N2, NUM_CLASSES)
    assert jnp.allclose(out2, ref2, atol=1e-4, rtol=1e-4), "tiled/masked mismatch vs JAX reference"

    print("KERNEL_OK")
</pallas_src>

<mosaic_0001>
module attributes {stable_mosaic.version = 11 : i64} {
  func.func @auxnet_kernel(%arg0: i32, %arg1: i32, %arg2: memref<2x8x128xf32, #tpu.memory_space<vmem>>, %arg3: memref<8x32xf32, #tpu.memory_space<vmem>>, %arg4: memref<1x32xf32, #tpu.memory_space<vmem>>, %arg5: memref<32x128xf32, #tpu.memory_space<vmem>>, %arg6: memref<1x128xf32, #tpu.memory_space<vmem>>, %arg7: memref<2x128xf32, #tpu.memory_space<vmem>>, %arg8: memref<2x8xf32, #tpu.memory_space<vmem>>) attributes {dimension_semantics = [#tpu.dimension_semantics<parallel>, #tpu.dimension_semantics<arbitrary>], iteration_bounds = array<i64: 1, 1>, scalar_prefetch = 0 : i64, scratch_operands = 1 : i64, tpu.core_type = #tpu.core_type<tc>, window_params = [{transform_indices = @transform_0, window_bounds = array<i64: 2, 8, 128>}, {pipeline_mode = #tpu.pipeline_mode<synchronous>, transform_indices = @transform_1, window_bounds = array<i64: 8, 32>}, {pipeline_mode = #tpu.pipeline_mode<synchronous>, transform_indices = @transform_2, window_bounds = array<i64: 1, 32>}, {pipeline_mode = #tpu.pipeline_mode<synchronous>, transform_indices = @transform_3, window_bounds = array<i64: 32, 128>}, {pipeline_mode = #tpu.pipeline_mode<synchronous>, transform_indices = @transform_4, window_bounds = array<i64: 1, 128>}, {transform_indices = @transform_5, window_bounds = array<i64: 2, 128>}]} {
    %c0_i32 = arith.constant 0 : i32
    %0 = arith.cmpi eq, %arg1, %c0_i32 : i32
    %1 = arith.extui %0 : i1 to i32
    %c0_i32_0 = arith.constant 0 : i32
    %2 = arith.cmpi ne, %1, %c0_i32_0 : i32
    scf.if %2 {
      %cst_9 = arith.constant 0.000000e+00 : f32
      %11 = vector.broadcast %cst_9 : f32 to vector<2x8xf32>
      %c0_10 = arith.constant 0 : index
      %c0_11 = arith.constant 0 : index
      %12 = vector.load %arg8[%c0_10, %c0_11] : memref<2x8xf32, #tpu.memory_space<vmem>>, vector<2x8xf32>
      tpu.vector_store %arg8[%c0_10, %c0_11], %11 {strides = array<i32>} : memref<2x8xf32, #tpu.memory_space<vmem>>, vector<2x8xf32>,
    } else {
    }
    %c0 = arith.constant 0 : index
    %c0_1 = arith.constant 0 : index
    %c0_2 = arith.constant 0 : index
    %3 = vector.load %arg2[%c0, %c0_1, %c0_2] : memref<2x8x128xf32, #tpu.memory_space<vmem>>, vector<2x8x128xf32>
    %c0_3 = arith.constant 0 : index
    %c0_4 = arith.constant 0 : index
    %4 = vector.load %arg8[%c0_3, %c0_4] : memref<2x8xf32, #tpu.memory_space<vmem>>, vector<2x8xf32>
    %cst = arith.constant dense<0.000000e+00> : vector<2x8xf32>
    %5 = vector.multi_reduction <add>, %3, %cst [2] : vector<2x8x128xf32> to vector<2x8xf32>
    %6 = arith.addf %4, %5 : vector<2x8xf32>
    %c0_5 = arith.constant 0 : index
    %c0_6 = arith.constant 0 : index
    %7 = vector.load %arg8[%c0_5, %c0_6] : memref<2x8xf32, #tpu.memory_space<vmem>>, vector<2x8xf32>
    tpu.vector_store %arg8[%c0_5, %c0_6], %6 {strides = array<i32>} : memref<2x8xf32, #tpu.memory_space<vmem>>, vector<2x8xf32>,
    %c0_i32_7 = arith.constant 0 : i32
    %8 = arith.cmpi eq, %arg1, %c0_i32_7 : i32
    %9 = arith.extui %8 : i1 to i32
    %c0_i32_8 = arith.constant 0 : i32
    %10 = arith.cmpi ne, %9, %c0_i32_8 : i32
    scf.if %10 {
      %c0_9 = arith.constant 0 : index
      %c0_10 = arith.constant 0 : index
      %11 = vector.load %arg8[%c0_9, %c0_10] : memref<2x8xf32, #tpu.memory_space<vmem>>, vector<2x8xf32>
      %c0_11 = arith.constant 0 : index
      %c0_12 = arith.constant 0 : index
      %12 = vector.load %arg3[%c0_11, %c0_12] : memref<8x32xf32, #tpu.memory_space<vmem>>, vector<8x32xf32>
      %cst_13 = arith.constant dense<0.000000e+00> : vector<2x32xf32>
      %13 = tpu.matmul %11, %12, %cst_13 {dimension_numbers = #tpu.dot_dimension_numbers<[1], [0], [0], [1], [0, 0, 1, 1], [], []>} : vector<2x8xf32>, vector<8x32xf32>, vector<2x32xf32> -> vector<2x32xf32>
      %c0_14 = arith.constant 0 : index
      %c0_15 = arith.constant 0 : index
      %14 = vector.load %arg4[%c0_14, %c0_15] : memref<1x32xf32, #tpu.memory_space<vmem>>, vector<1x32xf32>
      %15 = vector.broadcast %14 : vector<1x32xf32> to vector<2x32xf32>
      %16 = arith.addf %13, %15 : vector<2x32xf32>
      %cst_16 = arith.constant 0.000000e+00 : f32
      %17 = vector.broadcast %cst_16 : f32 to vector<2x32xf32>
      %18 = arith.maximumf %16, %17 : vector<2x32xf32>
      %c0_17 = arith.constant 0 : index
      %c0_18 = arith.constant 0 : index
      %19 = vector.load %arg5[%c0_17, %c0_18] : memref<32x128xf32, #tpu.memory_space<vmem>>, vector<32x128xf32>
      %cst_19 = arith.constant dense<0.000000e+00> : vector<2x128xf32>
      %20 = tpu.matmul %18, %19, %cst_19 {dimension_numbers = #tpu.dot_dimension_numbers<[1], [0], [0], [1], [0, 0, 1, 1], [], []>} : vector<2x32xf32>, vector<32x128xf32>, vector<2x128xf32> -> vector<2x128xf32>
      %c0_20 = arith.constant 0 : index
      %c0_21 = arith.constant 0 : index
      %21 = vector.load %arg6[%c0_20, %c0_21] : memref<1x128xf32, #tpu.memory_space<vmem>>, vector<1x128xf32>
      %22 = vector.broadcast %21 : vector<1x128xf32> to vector<2x128xf32>
      %23 = arith.addf %20, %22 : vector<2x128xf32>
      %c0_22 = arith.constant 0 : index
      %c0_23 = arith.constant 0 : index
      %24 = vector.load %arg7[%c0_22, %c0_23] : memref<2x128xf32, #tpu.memory_space<vmem>>, vector<2x128xf32>
      tpu.vector_store %arg7[%c0_22, %c0_23], %23 {strides = array<i32>} : memref<2x128xf32, #tpu.memory_space<vmem>>, vector<2x128xf32>,
    } else {
    }
    return
  }
  func.func @transform_0(%arg0: i32, %arg1: i32) -> (i32, i32, i32) {
    %c0_i32 = arith.constant 0 : i32
    %c0_i32_0 = arith.constant 0 : i32
    return %arg0, %c0_i32, %arg1 : i32, i32, i32
  }
  func.func @transform_1(%arg0: i32, %arg1: i32) -> (i32, i32) {
    %c0_i32 = arith.constant 0 : i32
    %c0_i32_0 = arith.constant 0 : i32
    %c0_i32_1 = arith.constant 0 : i32
    return %c0_i32, %c0_i32_0 : i32, i32
  }
  func.func @transform_2(%arg0: i32, %arg1: i32) -> (i32, i32) {
    %c0_i32 = arith.constant 0 : i32
    %c0_i32_0 = arith.constant 0 : i32
    %c0_i32_1 = arith.constant 0 : i32
    return %c0_i32, %c0_i32_0 : i32, i32
  }
  func.func @transform_3(%arg0: i32, %arg1: i32) -> (i32, i32) {
    %c0_i32 = arith.constant 0 : i32
    %c0_i32_0 = arith.constant 0 : i32
    %c0_i32_1 = arith.constant 0 : i32
    return %c0_i32, %c0_i32_0 : i32, i32
  }
  func.func @transform_4(%arg0: i32, %arg1: i32) -> (i32, i32) {
    %c0_i32 = arith.constant 0 : i32
    %c0_i32_0 = arith.constant 0 : i32
    %c0_i32_1 = arith.constant 0 : i32
    return %c0_i32, %c0_i32_0 : i32, i32
  }
  func.func @transform_5(%arg0: i32, %arg1: i32) -> (i32, i32) {
    %c0_i32 = arith.constant 0 : i32
    %c0_i32_0 = arith.constant 0 : i32
    return %arg0, %c0_i32 : i32, i32
  }
}

</mosaic_0001>

<llo_original>
// kernel: tpu_custom_call.1
$region0: #{tpu_custom_call.1}
  #allocation0 [shape = 'u32[]', space=smem, size = 0x4, offset = 0x4, fixed_abs, tag = 'smem constant byte address 0x4 - core index']
  #allocation1 [shape = 'u32[144,128]{1,0:T(1,128)}', space=vmem, size = 0x12000, scoped, tag = 'internal scratch']
  #allocation2 [shape = 'f32[2,8]{1,0:T(2,128)}', space=vmem, size = 0x400, scoped, tag = 'scratch operand']
  %s0 = inlined_call_operand.hbm [shape: f32[2,8,128], index: 0, kind: input, shape index: {}]
  %s1 = inlined_call_operand.hbm [shape: f32[8,32], index: 1, kind: input, shape index: {}]
  %s2 = inlined_call_operand.vmem [shape: f32[1,32], index: 2, kind: input, shape index: {}]
  %s3 = inlined_call_operand.hbm [shape: f32[32,128], index: 3, kind: input, shape index: {}]
  %s4 = inlined_call_operand.vmem [shape: f32[1,128], index: 4, kind: input, shape index: {}]
  %s5 = inlined_call_operand.hbm [shape: f32[2,128], index: 5, kind: output, shape index: {}]
  %s6 = sld [smem:[#allocation0]]
  $region50: #{tpu_custom_call.1} parent=0
    _
  %s8 = ssub.s32 1, %s6
  %s9 = scalar_select 0, %s8, %s6
  $region1: #{tpu_custom_call.1} parent=0
    #allocation3 [shape = 'u8[8192]{0}', space=vmem, size = 0x2000, scoped, tag = 'input window, operand 0, single buffered']
    #allocation4 [shape = 's32[1]{0}', space=sflag, size = 0x4, scoped, tag = 'scoped memory for tpu_custom_call.1']
    #allocation5 [shape = 's32[1]{0}', space=sflag, size = 0x4, scoped, tag = 'scoped memory for tpu_custom_call.1']
    #allocation6 [shape = 'u8[4096]{0}', space=vmem, size = 0x1000, scoped, tag = 'input window, operand 1, single buffered']
    #allocation7 [shape = 's32[1]{0}', space=sflag, size = 0x4, scoped, tag = 'scoped memory for tpu_custom_call.1']
    #allocation8 [shape = 'u8[16384]{0}', space=vmem, size = 0x4000, scoped, tag = 'input window, operand 3, single buffered']
    #allocation9 [shape = 'u8[1024]{0}', space=vmem, size = 0x400, scoped, tag = 'output window, operand 0, single buffered']
    %10 = vsyncpa [#allocation4], 0
    %11 = vsyncpa [#allocation7], 0
    %12 = vsyncpa [#allocation5], 0
    // Predicated region
    $region2: #{tpu_custom_call.1} parent=1 // pred_check
      _
    $region3: #{tpu_custom_call.1} parent=1 // pred_check_branch
      %14 = sbr.rel (0) target = $region5
    $region4: #{tpu_custom_call.1} parent=1 // pred_region
      %s16 = ssub.s32 256, 256
      %17 = vsyncadd [#allocation4], %s16
      %s18 = sshll.u32 [#allocation3], 4
      %s19 = int_to_ptr.vmem [resolvable:$true] %s18
      %24 = dma.hbm_to_vmem [thread:$0]  %s0, 256, %s19, [#allocation4], 128, 128, 8
    $region5: #{tpu_custom_call.1} parent=1 // pred_fallthru
      _
    // Predicated region
    $region6: #{tpu_custom_call.1} parent=1 // pred_check
      _
    $region7: #{tpu_custom_call.1} parent=1 // pred_check_branch
      %26 = sbr.rel (0) target = $region9
    $region8: #{tpu_custom_call.1} parent=1 // pred_region
      %s28 = ssub.s32 128, 128
      %29 = vsyncadd [#allocation7], %s28
      %s31 = sshll.u32 [#allocation6], 4
      %s32 = int_to_ptr.vmem [resolvable:$true] %s31
      %34 = dma.hbm_to_vmem [thread:$0]  %s1, 128, %s32, [#allocation7]
    $region9: #{tpu_custom_call.1} parent=1 // pred_fallthru
      _
    // Predicated region
    $region10: #{tpu_custom_call.1} parent=1 // pred_check
      _
    $region11: #{tpu_custom_call.1} parent=1 // pred_check_branch
      %36 = sbr.rel (0) target = $region13
    $region12: #{tpu_custom_call.1} parent=1 // pred_region
      _
    $region13: #{tpu_custom_call.1} parent=1 // pred_fallthru
      _
    // Predicated region
    $region14: #{tpu_custom_call.1} parent=1 // pred_check
      _
    $region15: #{tpu_custom_call.1} parent=1 // pred_check_branch
      %38 = sbr.rel (0) target = $region17
    $region16: #{tpu_custom_call.1} parent=1 // pred_region
      %s40 = ssub.s32 512, 512
      %41 = vsyncadd [#allocation7], %s40
      %s42 = sshll.u32 [#allocation8], 4
      %s43 = int_to_ptr.vmem [resolvable:$true] %s42
      %48 = dma.hbm_to_vmem [thread:$0]  %s3, 512, %s43, [#allocation7], 128, 128, 8
    $region17: #{tpu_custom_call.1} parent=1 // pred_fallthru
      _
    // Predicated region
    $region18: #{tpu_custom_call.1} parent=1 // pred_check
      _
    $region19: #{tpu_custom_call.1} parent=1 // pred_check_branch
      %50 = sbr.rel (0) target = $region21
    $region20: #{tpu_custom_call.1} parent=1 // pred_region
      _
    $region21: #{tpu_custom_call.1} parent=1 // pred_fallthru
      _
    // Predicated region
    $region22: #{tpu_custom_call.1} parent=1 // pred_check
      _
    $region23: #{tpu_custom_call.1} parent=1 // pred_check_branch
      %52 = sbr.rel (0) target = $region25
    $region24: #{tpu_custom_call.1} parent=1 // pred_region
      %53 = dma.done [#allocation4], 256
    $region25: #{tpu_custom_call.1} parent=1 // pred_fallthru
      _
    // Predicated region
    $region26: #{tpu_custom_call.1} parent=1 // pred_check
      _
    $region27: #{tpu_custom_call.1} parent=1 // pred_check_branch
      %55 = sbr.rel (0) target = $region29
    $region28: #{tpu_custom_call.1} parent=1 // pred_region
      %56 = dma.done [#allocation7], 128
    $region29: #{tpu_custom_call.1} parent=1 // pred_fallthru
      _
    // Predicated region
    $region30: #{tpu_custom_call.1} parent=1 // pred_check
      _
    $region31: #{tpu_custom_call.1} parent=1 // pred_check_branch
      %58 = sbr.rel (0) target = $region33
    $region32: #{tpu_custom_call.1} parent=1 // pred_region
      %59 = dma.done [#allocation7], 512
    $region33: #{tpu_custom_call.1} parent=1 // pred_fallthru
      _
    %p60 = scmp.eq.s32.totalorder 0, 0
    // Predicated region
    $region34: #{tpu_custom_call.1} parent=1 // pred_check
      %p61 = pneg %p60
    $region35: #{tpu_custom_call.1} parent=1 // pred_check_branch
      %63 = sbr.rel (%p61) target = $region37
    $region36: #{tpu_custom_call.1} parent=1 // pred_region
      %vm64 = vcmask 58368
      %65 = vst.msk [vmem:[#allocation2] sm:$0x3] %vm64, 0.0
    $region37: #{tpu_custom_call.1} parent=1 // pred_fallthru
      _
    %v66 = vld [vmem:[#allocation3] sm:$0xff]
    %v67 = vld [vmem:[#allocation3 + $0x8] sm:$0xff]
    %v68 = vld [vmem:[#allocation2] sm:$0x3]
    %69 = vadd.xlane.f32.xlu0 %v66
    %v70 = vpop.xlane.xlu0 %69
    %71 = vadd.xlane.f32.xlu0 %v67
    %v72 = vpop.xlane.xlu0 %71
    %v75 = vlaneseq
    %v76 = vand.u32 %v75, 127
    %v77 = vlaneseq
    %v78 = vshrl.u32 %v77, 7
    %v79 = vsub.s32 %v76, %v78
    %v80 = vrot.slane %v70, %v79
    %v81 = vlaneseq
    %v82 = vshrl.u32 %v81, 7
    %v83 = vsub.s32 %v76, %v82
    %v84 = vrot.slane %v72, %v83
    %vm85 = vcmask 1041409
    %v86 = vsel %vm85, %v84, %v80
    %v88 = vadd.f32 %v68, %v86
    %vm89 = vcmask 58368
    %90 = vst.msk [vmem:[#allocation2] sm:$0x3] %vm89, %v88
    // Predicated region
    $region38: #{tpu_custom_call.1} parent=1 // pred_check
      %p91 = pneg %p60
    $region39: #{tpu_custom_call.1} parent=1 // pred_check_branch
      %93 = sbr.rel (%p91) target = $region41
    $region40: #{tpu_custom_call.1} parent=1 // pred_region
      %v94 = vld [vmem:[#allocation2] sm:$0x3]
      %v95 = vld [vmem:[#allocation6] sm:$0xff]
      %v96 = vld [vmem:[%s2] sm:$0x1]
      %v98 = vlaneseq
      %v99 = vshrl.u32 %v98, 7
      %v100 = vsub.s32 0, %v99
      %v101 = vrot.slane %v96, %v100
      %vm103 = vcmask 64512
      %v105 = vsel %vm103, %v94, 0
      %107 = vmatprep.subr.mxu0 0.0
      %108 = vmatpush1.msra.mxu0 %v95
      %109 = vmatprep.subr.mxu0 0.0
      %110 = vmatpush1.msra.mxu0 0.0
      %111 = vmatprep.subr.mxu0 0.0
      %112 = vmatpush1.msra.mxu0 0.0
      %113 = vmatprep.subr.mxu0 0.0
      %114 = vmatpush1.msra.mxu0 0.0
      %115 = vmatprep.subr.mxu0 0.0
      %116 = vmatpush1.msra.mxu0 0.0
      %117 = vmatprep.subr.mxu0 0.0
      %118 = vmatpush1.msra.mxu0 0.0
      %119 = vmatprep.subr.mxu0 0.0
      %120 = vmatpush1.msra.mxu0 0.0
      %121 = vmatprep.subr.mxu0 0.0
      %122 = vmatpush1.msra.mxu0 0.0
      %123 = vmatprep.subr.mxu0 0.0
      %124 = vmatpush1.msra.mxu0 0.0
      %125 = vmatprep.subr.mxu0 0.0
      %126 = vmatpush1.msra.mxu0 0.0
      %127 = vmatprep.subr.mxu0 0.0
      %128 = vmatpush1.msra.mxu0 0.0
      %129 = vmatprep.subr.mxu0 0.0
      %130 = vmatpush1.msra.mxu0 0.0
      %131 = vmatprep.subr.mxu0 0.0
      %132 = vmatpush1.msra.mxu0 0.0
      %133 = vmatprep.subr.mxu0 0.0
      %134 = vmatpush1.msra.mxu0 0.0
      %135 = vmatprep.subr.mxu0 0.0
      %136 = vmatpush1.msra.mxu0 0.0
      %137 = vmatprep.subr.mxu0 0.0
      %138 = vmatpush1.msra.mxu0 0.0
      %139 = vmatprep.subr.mxu0 0.0
      %140 = vmatpush1.msra.mxu0 0.0
      %141 = vmatprep.subr.mxu0 0.0
      %142 = vmatpush1.msra.mxu0 0.0
      %143 = vmatprep.subr.mxu0 0.0
      %144 = vmatpush1.msra.mxu0 0.0
      %145 = vmatprep.subr.mxu0 0.0
      %146 = vmatpush1.msra.mxu0 0.0
      %147 = vmatprep.subr.mxu0 0.0
      %148 = vmatpush1.msra.mxu0 0.0
      %149 = vmatprep.subr.mxu0 0.0
      %150 = vmatpush1.msra.mxu0 0.0
      %151 = vmatprep.subr.mxu0 0.0
      %152 = vmatpush1.msra.mxu0 0.0
      %153 = vmatprep.subr.mxu0 0.0
      %154 = vmatpush1.msra.mxu0 0.0
      %155 = vmatprep.subr.mxu0 0.0
      %156 = vmatpush1.msra.mxu0 0.0
      %157 = vmatprep.subr.mxu0 0.0
      %158 = vmatpush1.msra.mxu0 0.0
      %159 = vmatprep.subr.mxu0 0.0
      %160 = vmatpush1.msra.mxu0 0.0
      %161 = vmatprep.subr.mxu0 0.0
      %162 = vmatpush1.msra.mxu0 0.0
      %163 = vmatprep.subr.mxu0 0.0
      %164 = vmatpush1.msra.mxu0 0.0
      %165 = vmatprep.subr.mxu0 0.0
      %166 = vmatpush1.msra.mxu0 0.0
      %167 = vmatprep.subr.mxu0 0.0
      %168 = vmatpush1.msra.mxu0 0.0
      %169 = vmatprep.subr.mxu0 0.0
      %170 = vmatpush1.msra.mxu0 0.0
      %171 = vmatprep.mubr.f32.mxu0 0.0
      %172 = vmatmul.mubr.f32.gmra.mrb[0].mxu0 %v105
      %v173 = vpop.f32.mrb[0].mxu0
      %v174 = vadd.f32 %v101, %v173
      %v175 = vpop.f32.mrb[0].mxu0
      %176 = vdwg.mxu0
      %v177 = vmax.f32 %v174, 0.0
      %v178 = vld [vmem:[#allocation8] sm:$0xff]
      %v179 = vld [vmem:[#allocation8 + $0x8] sm:$0xff]
      %v180 = vld [vmem:[#allocation8 + $0x10] sm:$0xff]
      %v181 = vld [vmem:[#allocation8 + $0x18] sm:$0xff]
      %v182 = vld [vmem:[%s4] sm:$0x1]
      %v184 = vlaneseq
      %v185 = vshrl.u32 %v184, 7
      %v186 = vsub.s32 0, %v185
      %v187 = vrot.slane %v182, %v186
      %vm189 = vcmask 261120
      %v191 = vsel %vm189, %v177, 0
      %193 = vmatprep.subr.mxu0 0.0
      %194 = vmatpush1.msra.mxu0 %v178
      %195 = vmatprep.subr.mxu0 0.0
      %196 = vmatpush1.msra.mxu0 %v179
      %197 = vmatprep.subr.mxu0 0.0
      %198 = vmatpush1.msra.mxu0 %v180
      %199 = vmatprep.subr.mxu0 0.0
      %200 = vmatpush1.msra.mxu0 %v181
      %201 = vmatprep.subr.mxu0 0.0
      %202 = vmatpush1.msra.mxu0 0.0
      %203 = vmatprep.subr.mxu0 0.0
      %204 = vmatpush1.msra.mxu0 0.0
      %205 = vmatprep.subr.mxu0 0.0
      %206 = vmatpush1.msra.mxu0 0.0
      %207 = vmatprep.subr.mxu0 0.0
      %208 = vmatpush1.msra.mxu0 0.0
      %209 = vmatprep.subr.mxu0 0.0
      %210 = vmatpush1.msra.mxu0 0.0
      %211 = vmatprep.subr.mxu0 0.0
      %212 = vmatpush1.msra.mxu0 0.0
      %213 = vmatprep.subr.mxu0 0.0
      %214 = vmatpush1.msra.mxu0 0.0
      %215 = vmatprep.subr.mxu0 0.0
      %216 = vmatpush1.msra.mxu0 0.0
      %217 = vmatprep.subr.mxu0 0.0
      %218 = vmatpush1.msra.mxu0 0.0
      %219 = vmatprep.subr.mxu0 0.0
      %220 = vmatpush1.msra.mxu0 0.0
      %221 = vmatprep.subr.mxu0 0.0
      %222 = vmatpush1.msra.mxu0 0.0
      %223 = vmatprep.subr.mxu0 0.0
      %224 = vmatpush1.msra.mxu0 0.0
      %225 = vmatprep.subr.mxu0 0.0
      %226 = vmatpush1.msra.mxu0 0.0
      %227 = vmatprep.subr.mxu0 0.0
      %228 = vmatpush1.msra.mxu0 0.0
      %229 = vmatprep.subr.mxu0 0.0
      %230 = vmatpush1.msra.mxu0 0.0
      %231 = vmatprep.subr.mxu0 0.0
      %232 = vmatpush1.msra.mxu0 0.0
      %233 = vmatprep.subr.mxu0 0.0
      %234 = vmatpush1.msra.mxu0 0.0
      %235 = vmatprep.subr.mxu0 0.0
      %236 = vmatpush1.msra.mxu0 0.0
      %237 = vmatprep.subr.mxu0 0.0
      %238 = vmatpush1.msra.mxu0 0.0
      %239 = vmatprep.subr.mxu0 0.0
      %240 = vmatpush1.msra.mxu0 0.0
      %241 = vmatprep.subr.mxu0 0.0
      %242 = vmatpush1.msra.mxu0 0.0
      %243 = vmatprep.subr.mxu0 0.0
      %244 = vmatpush1.msra.mxu0 0.0
      %245 = vmatprep.subr.mxu0 0.0
      %246 = vmatpush1.msra.mxu0 0.0
      %247 = vmatprep.subr.mxu0 0.0
      %248 = vmatpush1.msra.mxu0 0.0
      %249 = vmatprep.subr.mxu0 0.0
      %250 = vmatpush1.msra.mxu0 0.0
      %251 = vmatprep.subr.mxu0 0.0
      %252 = vmatpush1.msra.mxu0 0.0
      %253 = vmatprep.subr.mxu0 0.0
      %254 = vmatpush1.msra.mxu0 0.0
      %255 = vmatprep.subr.mxu0 0.0
      %256 = vmatpush1.msra.mxu0 0.0
      %257 = vmatprep.mubr.f32.mxu0 0.0
      %258 = vmatmul.mubr.f32.gmra.mrb[0].mxu0 %v191
      %v259 = vpop.f32.mrb[0].mxu0
      %v260 = vadd.f32 %v187, %v259
      %v261 = vpop.f32.mrb[0].mxu0
      %262 = vdwg.mxu0
      %263 = vst [vmem:[#allocation9] sm:$0x3] %v260
    $region41: #{tpu_custom_call.1} parent=1 // pred_fallthru
      _
    // Predicated region
    $region42: #{tpu_custom_call.1} parent=1 // pred_check
      _
    $region43: #{tpu_custom_call.1} parent=1 // pred_check_branch
      %265 = sbr.rel (0) target = $region45
    $region44: #{tpu_custom_call.1} parent=1 // pred_region
      %s267 = ssub.s32 32, 32
      %268 = vsyncadd [#allocation5], %s267
      %s270 = sshll.u32 [#allocation9], 4
      %s271 = int_to_ptr.vmem [resolvable:$true] %s270
      %273 = dma.vmem_to_hbm [thread:$0]  %s271, 32, %s5, [#allocation5]
    $region45: #{tpu_custom_call.1} parent=1 // pred_fallthru
      _
    // Predicated region
    $region46: #{tpu_custom_call.1} parent=1 // pred_check
      _
    $region47: #{tpu_custom_call.1} parent=1 // pred_check_branch
      %275 = sbr.rel (0) target = $region49
    $region48: #{tpu_custom_call.1} parent=1 // pred_region
      %276 = dma.done [#allocation5], 32
    $region49: #{tpu_custom_call.1} parent=1 // pred_fallthru
      _
    %277 = vsyncpa [#allocation4], 1
    %278 = vsyncpa [#allocation7], 1
    %279 = vsyncpa [#allocation5], 1

</llo_original>
